<compile_context>
chip_gen: v6e
topology: v6e:2x2x1
jax: 0.10.0
libtpu: 0.0.40
codegen_flags: <defaults>
</compile_context>

<pallas_src>
import functools

import jax
import jax.numpy as jnp
from jax import lax
from jax.experimental import pallas as pl
from jax.experimental.pallas import tpu as pltpu


def _euler_kernel(dt_ref, u_ref, w_ref, b_ref, out_ref, *, n_steps, unroll, split):
    """Runs n_steps of explicit Euler with the state held in vregs.

    dt_ref : SMEM (1,)      step size  (t_final - t_initial) / n_steps
    u_ref  : VMEM (TB, H)   initial state tile (TB = batch block)
    w_ref  : VMEM (H, H)    dynamics weight (bf16 by default, loop invariant)
    b_ref  : VMEM (1, H)    dynamics bias (f32, loop invariant)
    out_ref: VMEM (TB, H)   final state tile (written once after the loop)
    """
    # Scalar dt: compiler splats into a single vreg (no (TB,H) constant).
    dt = dt_ref[0]
    # Loop invariants, kept narrow: W in its DMA'd dtype, bias as (1,H).
    w_mxu = w_ref[...]
    bias = b_ref[...]

    def euler_step(u):
        # MXU matmul (f32 accumulate) -> EUP tanh -> VPU axpy; state stays f32.
        z = jnp.dot(u.astype(w_mxu.dtype), w_mxu,
                    preferred_element_type=jnp.float32) + bias
        return u + dt * jnp.tanh(z)

    if split:
        # Two independent row-subtile chains per step: the bottom half's matmul
        # is issued before the top half's result is consumed, filling the MXU
        # result FIFO / EUP latency bubbles.
        half = out_ref.shape[0] // 2

        def body(step, carry):
            del step  # dynamics are time independent
            u_top, u_bot = carry
            z_top = jnp.dot(u_top.astype(w_mxu.dtype), w_mxu,
                            preferred_element_type=jnp.float32)
            z_bot = jnp.dot(u_bot.astype(w_mxu.dtype), w_mxu,
                            preferred_element_type=jnp.float32)
            u_top = u_top + dt * jnp.tanh(z_top + bias)
            u_bot = u_bot + dt * jnp.tanh(z_bot + bias)
            return (u_top, u_bot)

        u_top, u_bot = lax.fori_loop(0, n_steps, body,
                                     (u_ref[:half, :], u_ref[half:, :]),
                                     unroll=unroll)
        out_ref[:half, :] = u_top
        out_ref[half:, :] = u_bot
    else:
        def body(step, u):
            del step  # dynamics are time independent
            return euler_step(u)

        # State carried in registers; single VMEM store at the end.
        out_ref[...] = lax.fori_loop(0, n_steps, body, u_ref[...], unroll=unroll)


def _choose_block_b(batch):
    """Batch tile: <=128 rows, divides `batch`, and (when batch >= ~32) yields
    >=2 grid points so the "parallel" axis can shard onto both v7x TensorCores."""
    if batch <= 16:
        return batch                      # tiny batch: one tile, no split
    half = (batch // 2) // 8 * 8          # ~batch/2, sublane aligned
    cand = min(128, half)
    if cand >= 8 and batch % cand == 0:
        return cand
    # Fall back to the largest divisor of batch that is a multiple of 8, <=128.
    for blk in range(min(128, (batch // 8) * 8), 7, -8):
        if batch % blk == 0:
            return blk
    return batch                          # ragged batch: single full tile


def euler_integrate_pallas(u0, w, b, t_initial, t_final, n_steps,
                           *, block_b=None, mxu_bf16=True, donate_u0=False):
    """Pallas-backed equivalent of BasicIntegrator.forward with method='euler'.

    mxu_bf16=True  : bf16 MXU operands with f32 accumulation (fastest; per-step
                     rounding compounds slightly over long rollouts).
    mxu_bf16=False : fully f32 matmul (multi-pass MXU) for exact fidelity to
                     the PyTorch f32 Euler loop, at a throughput cost.
    donate_u0=True : aliases u0's HBM buffer to the output; the caller must not
                     read u0 afterwards.
    NOTE: this workload at the module's default scale (batch=8, n_steps=10) is
    launch-overhead bound; the effective lever is batching many independent
    integrations into one call along the batch axis, which this wrapper
    supports directly (they tile onto the grid and, on v7x, onto both cores).
    """
    batch, hidden = u0.shape
    if block_b is None:
        block_b = _choose_block_b(batch)
    if batch % block_b != 0:
        block_b = batch  # TODO(synk): masked partial last tile instead

    dt = jnp.asarray([(t_final - t_initial) / float(n_steps)], dtype=jnp.float32)
    w = jnp.asarray(w, dtype=jnp.bfloat16 if mxu_bf16 else jnp.float32)
    b = jnp.asarray(b, dtype=jnp.float32).reshape(1, hidden)

    # Split into two row-subtile chains only when each half is sublane aligned.
    split = (block_b % 16 == 0)
    # Full unroll only for short rollouts; bounded unroll keeps code size and
    # vreg live ranges sane when n_steps grows (halved when the body is split).
    unroll = n_steps if n_steps <= 16 else (4 if split else 8)
    kernel = functools.partial(_euler_kernel, n_steps=n_steps,
                               unroll=unroll, split=split)

    return pl.pallas_call(
        kernel,
        out_shape=jax.ShapeDtypeStruct((batch, hidden), jnp.float32),
        grid_spec=pltpu.PrefetchScalarGridSpec(
            num_scalar_prefetch=0,
            grid=(batch // block_b,),
            in_specs=[
                pl.BlockSpec(memory_space=pltpu.SMEM),               # dt (1,)
                pl.BlockSpec((block_b, hidden), lambda i: (i, 0)),   # u0 tile
                pl.BlockSpec((hidden, hidden), lambda i: (0, 0)),    # W (invariant)
                pl.BlockSpec((1, hidden), lambda i: (0, 0)),         # bias (invariant)
            ],
            out_specs=pl.BlockSpec((block_b, hidden), lambda i: (i, 0)),
        ),
        compiler_params=pltpu.CompilerParams(
            dimension_semantics=("parallel",)),
        # Inputs: 0=dt, 1=u0, 2=W, 3=b.
        input_output_aliases=({1: 0} if donate_u0 else {}),
    )(dt, u0, w, b)


def euler_integrate_ref(u0, w, b, t_initial, t_final, n_steps,
                        *, matmul_dtype=jnp.float32):
    """Pure-JAX reference (mirrors the PyTorch Euler loop)."""
    dt = (t_final - t_initial) / float(n_steps)
    b = jnp.asarray(b, dtype=jnp.float32).reshape(1, -1)
    u = u0
    for _ in range(n_steps):
        z = jnp.dot(u.astype(matmul_dtype), w.astype(matmul_dtype),
                    preferred_element_type=jnp.float32) + b
        u = u + dt * jnp.tanh(z)
    return u


if __name__ == "__main__":
    t_initial, t_final = 0.0, 1.0
    n_steps = 10
    hidden = 128

    key = jax.random.PRNGKey(0)
    k_u, k_w, k_b, k_u2 = jax.random.split(key, 4)

    # Deterministic "parameters" of the synthetic dynamics function f.
    w = jax.random.normal(k_w, (hidden, hidden), dtype=jnp.float32) * 0.05
    b = jax.random.normal(k_b, (1, hidden), dtype=jnp.float32) * 0.1

    # ---- Case 1: module-default tiny batch (single tile, donated u0) -------
    u0 = jax.random.normal(k_u, (8, hidden), dtype=jnp.float32)
    # References computed up-front (before any buffer aliasing on u0).
    ref_bf16 = euler_integrate_ref(u0, w, b, t_initial, t_final, n_steps,
                                   matmul_dtype=jnp.bfloat16)
    ref_f32 = euler_integrate_ref(u0, w, b, t_initial, t_final, n_steps)

    out = euler_integrate_pallas(u0, w, b, t_initial, t_final, n_steps,
                                 donate_u0=True)
    out = jax.block_until_ready(out)
    assert out.shape == (8, hidden)
    # Tight check vs a reference mirroring the kernel math (bf16 MXU, f32 acc).
    assert jnp.allclose(out, ref_bf16, atol=2e-3, rtol=2e-3), \
        "mismatch vs bf16-matmul reference"
    # Looser semantic-fidelity check vs the full-f32 Euler rollout.
    assert jnp.allclose(out, ref_f32, atol=5e-2, rtol=5e-2), \
        "mismatch vs f32 reference"

    # ---- Case 2: larger batch -> 2 grid points + split row-subtile chains --
    u0b = jax.random.normal(k_u2, (64, hidden), dtype=jnp.float32)
    ref_b = euler_integrate_ref(u0b, w, b, t_initial, t_final, n_steps,
                                matmul_dtype=jnp.bfloat16)
    out_b = jax.block_until_ready(
        euler_integrate_pallas(u0b, w, b, t_initial, t_final, n_steps))
    assert out_b.shape == (64, hidden)
    assert jnp.allclose(out_b, ref_b, atol=2e-3, rtol=2e-3), \
        "mismatch vs bf16-matmul reference (batched case)"

    print("KERNEL_OK")
</pallas_src>

<mosaic_0001>
module attributes {stable_mosaic.version = 11 : i64} {
  func.func @_euler_kernel(%arg0: i32, %arg1: memref<1xf32, #tpu.memory_space<smem>>, %arg2: memref<8x128xf32, #tpu.memory_space<vmem>>, %arg3: memref<128x128xbf16, #tpu.memory_space<vmem>>, %arg4: memref<1x128xf32, #tpu.memory_space<vmem>>, %arg5: memref<8x128xf32, #tpu.memory_space<vmem>>) attributes {dimension_semantics = [#tpu.dimension_semantics<parallel>], iteration_bounds = array<i64: 1>, scalar_prefetch = 0 : i64, scratch_operands = 0 : i64, tpu.core_type = #tpu.core_type<tc>, window_params = [{transform_indices = @transform_0, window_bounds = array<i64: 1>}, {transform_indices = @transform_1, window_bounds = array<i64: 8, 128>}, {pipeline_mode = #tpu.pipeline_mode<synchronous>, transform_indices = @transform_2, window_bounds = array<i64: 128, 128>}, {pipeline_mode = #tpu.pipeline_mode<synchronous>, transform_indices = @transform_3, window_bounds = array<i64: 1, 128>}, {transform_indices = @transform_4, window_bounds = array<i64: 8, 128>}]} {
    %c0 = arith.constant 0 : index
    %0 = memref.load %arg1[%c0] : memref<1xf32, #tpu.memory_space<smem>>
    %c0_0 = arith.constant 0 : index
    %c0_1 = arith.constant 0 : index
    %1 = vector.load %arg3[%c0_0, %c0_1] : memref<128x128xbf16, #tpu.memory_space<vmem>>, vector<128x128xbf16>
    %c0_2 = arith.constant 0 : index
    %c0_3 = arith.constant 0 : index
    %2 = vector.load %arg4[%c0_2, %c0_3] : memref<1x128xf32, #tpu.memory_space<vmem>>, vector<1x128xf32>
    %c0_4 = arith.constant 0 : index
    %c0_5 = arith.constant 0 : index
    %3 = vector.load %arg2[%c0_4, %c0_5] : memref<8x128xf32, #tpu.memory_space<vmem>>, vector<8x128xf32>
    %c0_i32 = arith.constant 0 : i32
    %4 = arith.truncf %3 : vector<8x128xf32> to vector<8x128xbf16>
    %cst = arith.constant dense<0.000000e+00> : vector<8x128xf32>
    %5 = tpu.matmul %4, %1, %cst {dimension_numbers = #tpu.dot_dimension_numbers<[1], [0], [0], [1], [0, 0, 1, 1], [], []>} : vector<8x128xbf16>, vector<128x128xbf16>, vector<8x128xf32> -> vector<8x128xf32>
    %6 = vector.broadcast %2 : vector<1x128xf32> to vector<8x128xf32>
    %7 = arith.addf %5, %6 : vector<8x128xf32>
    %8 = math.tanh %7 : vector<8x128xf32>
    %9 = vector.broadcast %0 : f32 to vector<8x128xf32>
    %10 = arith.mulf %9, %8 : vector<8x128xf32>
    %11 = arith.addf %3, %10 : vector<8x128xf32>
    %c1_i32 = arith.constant 1 : i32
    %12 = arith.truncf %11 : vector<8x128xf32> to vector<8x128xbf16>
    %cst_6 = arith.constant dense<0.000000e+00> : vector<8x128xf32>
    %13 = tpu.matmul %12, %1, %cst_6 {dimension_numbers = #tpu.dot_dimension_numbers<[1], [0], [0], [1], [0, 0, 1, 1], [], []>} : vector<8x128xbf16>, vector<128x128xbf16>, vector<8x128xf32> -> vector<8x128xf32>
    %14 = vector.broadcast %2 : vector<1x128xf32> to vector<8x128xf32>
    %15 = arith.addf %13, %14 : vector<8x128xf32>
    %16 = math.tanh %15 : vector<8x128xf32>
    %17 = vector.broadcast %0 : f32 to vector<8x128xf32>
    %18 = arith.mulf %17, %16 : vector<8x128xf32>
    %19 = arith.addf %11, %18 : vector<8x128xf32>
    %c2_i32 = arith.constant 2 : i32
    %20 = arith.truncf %19 : vector<8x128xf32> to vector<8x128xbf16>
    %cst_7 = arith.constant dense<0.000000e+00> : vector<8x128xf32>
    %21 = tpu.matmul %20, %1, %cst_7 {dimension_numbers = #tpu.dot_dimension_numbers<[1], [0], [0], [1], [0, 0, 1, 1], [], []>} : vector<8x128xbf16>, vector<128x128xbf16>, vector<8x128xf32> -> vector<8x128xf32>
    %22 = vector.broadcast %2 : vector<1x128xf32> to vector<8x128xf32>
    %23 = arith.addf %21, %22 : vector<8x128xf32>
    %24 = math.tanh %23 : vector<8x128xf32>
    %25 = vector.broadcast %0 : f32 to vector<8x128xf32>
    %26 = arith.mulf %25, %24 : vector<8x128xf32>
    %27 = arith.addf %19, %26 : vector<8x128xf32>
    %c3_i32 = arith.constant 3 : i32
    %28 = arith.truncf %27 : vector<8x128xf32> to vector<8x128xbf16>
    %cst_8 = arith.constant dense<0.000000e+00> : vector<8x128xf32>
    %29 = tpu.matmul %28, %1, %cst_8 {dimension_numbers = #tpu.dot_dimension_numbers<[1], [0], [0], [1], [0, 0, 1, 1], [], []>} : vector<8x128xbf16>, vector<128x128xbf16>, vector<8x128xf32> -> vector<8x128xf32>
    %30 = vector.broadcast %2 : vector<1x128xf32> to vector<8x128xf32>
    %31 = arith.addf %29, %30 : vector<8x128xf32>
    %32 = math.tanh %31 : vector<8x128xf32>
    %33 = vector.broadcast %0 : f32 to vector<8x128xf32>
    %34 = arith.mulf %33, %32 : vector<8x128xf32>
    %35 = arith.addf %27, %34 : vector<8x128xf32>
    %c4_i32 = arith.constant 4 : i32
    %36 = arith.truncf %35 : vector<8x128xf32> to vector<8x128xbf16>
    %cst_9 = arith.constant dense<0.000000e+00> : vector<8x128xf32>
    %37 = tpu.matmul %36, %1, %cst_9 {dimension_numbers = #tpu.dot_dimension_numbers<[1], [0], [0], [1], [0, 0, 1, 1], [], []>} : vector<8x128xbf16>, vector<128x128xbf16>, vector<8x128xf32> -> vector<8x128xf32>
    %38 = vector.broadcast %2 : vector<1x128xf32> to vector<8x128xf32>
    %39 = arith.addf %37, %38 : vector<8x128xf32>
    %40 = math.tanh %39 : vector<8x128xf32>
    %41 = vector.broadcast %0 : f32 to vector<8x128xf32>
    %42 = arith.mulf %41, %40 : vector<8x128xf32>
    %43 = arith.addf %35, %42 : vector<8x128xf32>
    %c5_i32 = arith.constant 5 : i32
    %44 = arith.truncf %43 : vector<8x128xf32> to vector<8x128xbf16>
    %cst_10 = arith.constant dense<0.000000e+00> : vector<8x128xf32>
    %45 = tpu.matmul %44, %1, %cst_10 {dimension_numbers = #tpu.dot_dimension_numbers<[1], [0], [0], [1], [0, 0, 1, 1], [], []>} : vector<8x128xbf16>, vector<128x128xbf16>, vector<8x128xf32> -> vector<8x128xf32>
    %46 = vector.broadcast %2 : vector<1x128xf32> to vector<8x128xf32>
    %47 = arith.addf %45, %46 : vector<8x128xf32>
    %48 = math.tanh %47 : vector<8x128xf32>
    %49 = vector.broadcast %0 : f32 to vector<8x128xf32>
    %50 = arith.mulf %49, %48 : vector<8x128xf32>
    %51 = arith.addf %43, %50 : vector<8x128xf32>
    %c6_i32 = arith.constant 6 : i32
    %52 = arith.truncf %51 : vector<8x128xf32> to vector<8x128xbf16>
    %cst_11 = arith.constant dense<0.000000e+00> : vector<8x128xf32>
    %53 = tpu.matmul %52, %1, %cst_11 {dimension_numbers = #tpu.dot_dimension_numbers<[1], [0], [0], [1], [0, 0, 1, 1], [], []>} : vector<8x128xbf16>, vector<128x128xbf16>, vector<8x128xf32> -> vector<8x128xf32>
    %54 = vector.broadcast %2 : vector<1x128xf32> to vector<8x128xf32>
    %55 = arith.addf %53, %54 : vector<8x128xf32>
    %56 = math.tanh %55 : vector<8x128xf32>
    %57 = vector.broadcast %0 : f32 to vector<8x128xf32>
    %58 = arith.mulf %57, %56 : vector<8x128xf32>
    %59 = arith.addf %51, %58 : vector<8x128xf32>
    %c7_i32 = arith.constant 7 : i32
    %60 = arith.truncf %59 : vector<8x128xf32> to vector<8x128xbf16>
    %cst_12 = arith.constant dense<0.000000e+00> : vector<8x128xf32>
    %61 = tpu.matmul %60, %1, %cst_12 {dimension_numbers = #tpu.dot_dimension_numbers<[1], [0], [0], [1], [0, 0, 1, 1], [], []>} : vector<8x128xbf16>, vector<128x128xbf16>, vector<8x128xf32> -> vector<8x128xf32>
    %62 = vector.broadcast %2 : vector<1x128xf32> to vector<8x128xf32>
    %63 = arith.addf %61, %62 : vector<8x128xf32>
    %64 = math.tanh %63 : vector<8x128xf32>
    %65 = vector.broadcast %0 : f32 to vector<8x128xf32>
    %66 = arith.mulf %65, %64 : vector<8x128xf32>
    %67 = arith.addf %59, %66 : vector<8x128xf32>
    %c8_i32 = arith.constant 8 : i32
    %68 = arith.truncf %67 : vector<8x128xf32> to vector<8x128xbf16>
    %cst_13 = arith.constant dense<0.000000e+00> : vector<8x128xf32>
    %69 = tpu.matmul %68, %1, %cst_13 {dimension_numbers = #tpu.dot_dimension_numbers<[1], [0], [0], [1], [0, 0, 1, 1], [], []>} : vector<8x128xbf16>, vector<128x128xbf16>, vector<8x128xf32> -> vector<8x128xf32>
    %70 = vector.broadcast %2 : vector<1x128xf32> to vector<8x128xf32>
    %71 = arith.addf %69, %70 : vector<8x128xf32>
    %72 = math.tanh %71 : vector<8x128xf32>
    %73 = vector.broadcast %0 : f32 to vector<8x128xf32>
    %74 = arith.mulf %73, %72 : vector<8x128xf32>
    %75 = arith.addf %67, %74 : vector<8x128xf32>
    %c9_i32 = arith.constant 9 : i32
    %76 = arith.truncf %75 : vector<8x128xf32> to vector<8x128xbf16>
    %cst_14 = arith.constant dense<0.000000e+00> : vector<8x128xf32>
    %77 = tpu.matmul %76, %1, %cst_14 {dimension_numbers = #tpu.dot_dimension_numbers<[1], [0], [0], [1], [0, 0, 1, 1], [], []>} : vector<8x128xbf16>, vector<128x128xbf16>, vector<8x128xf32> -> vector<8x128xf32>
    %78 = vector.broadcast %2 : vector<1x128xf32> to vector<8x128xf32>
    %79 = arith.addf %77, %78 : vector<8x128xf32>
    %80 = math.tanh %79 : vector<8x128xf32>
    %81 = vector.broadcast %0 : f32 to vector<8x128xf32>
    %82 = arith.mulf %81, %80 : vector<8x128xf32>
    %83 = arith.addf %75, %82 : vector<8x128xf32>
    %c0_15 = arith.constant 0 : index
    %c0_16 = arith.constant 0 : index
    %84 = vector.load %arg5[%c0_15, %c0_16] : memref<8x128xf32, #tpu.memory_space<vmem>>, vector<8x128xf32>
    tpu.vector_store %arg5[%c0_15, %c0_16], %83 {strides = array<i32>} : memref<8x128xf32, #tpu.memory_space<vmem>>, vector<8x128xf32>,
    return
  }
  func.func @transform_0(%arg0: i32) -> i32 {
    %c0_i32 = arith.constant 0 : i32
    %c0_i32_0 = arith.constant 0 : i32
    return %c0_i32 : i32
  }
  func.func @transform_1(%arg0: i32) -> (i32, i32) {
    %c0_i32 = arith.constant 0 : i32
    %c0_i32_0 = arith.constant 0 : i32
    return %arg0, %c0_i32 : i32, i32
  }
  func.func @transform_2(%arg0: i32) -> (i32, i32) {
    %c0_i32 = arith.constant 0 : i32
    %c0_i32_0 = arith.constant 0 : i32
    %c0_i32_1 = arith.constant 0 : i32
    return %c0_i32, %c0_i32_0 : i32, i32
  }
  func.func @transform_3(%arg0: i32) -> (i32, i32) {
    %c0_i32 = arith.constant 0 : i32
    %c0_i32_0 = arith.constant 0 : i32
    %c0_i32_1 = arith.constant 0 : i32
    return %c0_i32, %c0_i32_0 : i32, i32
  }
  func.func @transform_4(%arg0: i32) -> (i32, i32) {
    %c0_i32 = arith.constant 0 : i32
    %c0_i32_0 = arith.constant 0 : i32
    return %arg0, %c0_i32 : i32, i32
  }
}

</mosaic_0001>

<llo_original>
// kernel: tpu_custom_call.1
$region0: #{tpu_custom_call.1}
  #allocation0 [shape = 'u32[]', space=smem, size = 0x4, offset = 0x4, fixed_abs, tag = 'smem constant byte address 0x4 - core index']
  #allocation1 [shape = 'u32[144,128]{1,0:T(1,128)}', space=vmem, size = 0x12000, scoped, tag = 'internal scratch']
  #allocation2 [shape = 'f32[1]{0:T(128)S(6)}', space=smem, size = 0x200, scoped, tag = 'scoped memory for tpu_custom_call.1']
  %s0 = inlined_call_operand.<no memory space> [shape: f32[1], index: 0, kind: input, shape index: {}]
  %s1 = inlined_call_operand.hbm [shape: f32[8,128], index: 1, kind: input, shape index: {}, may-alias: {1,4}]
  %s2 = inlined_call_operand.hbm [shape: bf16[128,128], index: 2, kind: input, shape index: {}]
  %s3 = inlined_call_operand.vmem [shape: f32[1,128], index: 3, kind: input, shape index: {}]
  %s4 = inlined_call_operand.hbm [shape: f32[8,128], index: 4, kind: output, shape index: {}, may-alias: {1,4}]
  %s5 = sld [smem:[#allocation0]]
  $region34: #{tpu_custom_call.1} parent=0
    _
  %s7 = ssub.s32 1, %s5
  %s8 = scalar_select 0, %s7, %s5
  %9 = sst [smem:[#allocation2]] %s0
  $region1: #{tpu_custom_call.1} parent=0
    #allocation3 [shape = 'u8[4096]{0}', space=vmem, size = 0x1000, scoped, tag = 'input window, operand 1, single buffered']
    #allocation4 [shape = 's32[1]{0}', space=sflag, size = 0x4, scoped, tag = 'scoped memory for tpu_custom_call.1']
    #allocation5 [shape = 's32[1]{0}', space=sflag, size = 0x4, scoped, tag = 'scoped memory for tpu_custom_call.1']
    #allocation6 [shape = 'u8[32768]{0}', space=vmem, size = 0x8000, scoped, tag = 'input window, operand 2, single buffered']
    #allocation7 [shape = 's32[1]{0}', space=sflag, size = 0x4, scoped, tag = 'scoped memory for tpu_custom_call.1']
    #allocation8 [shape = 'u8[4096]{0}', space=vmem, size = 0x1000, scoped, tag = 'output window, operand 0, single buffered']
    %10 = vsyncpa [#allocation4], 0
    %11 = vsyncpa [#allocation7], 0
    %12 = vsyncpa [#allocation5], 0
    // Predicated region
    $region2: #{tpu_custom_call.1} parent=1 // pred_check
      _
    $region3: #{tpu_custom_call.1} parent=1 // pred_check_branch
      %14 = sbr.rel (0) target = $region5
    $region4: #{tpu_custom_call.1} parent=1 // pred_region
      _
    $region5: #{tpu_custom_call.1} parent=1 // pred_fallthru
      _
    // Predicated region
    $region6: #{tpu_custom_call.1} parent=1 // pred_check
      _
    $region7: #{tpu_custom_call.1} parent=1 // pred_check_branch
      %16 = sbr.rel (0) target = $region9
    $region8: #{tpu_custom_call.1} parent=1 // pred_region
      %s18 = ssub.s32 128, 128
      %19 = vsyncadd [#allocation4], %s18
      %s21 = sshll.u32 [#allocation3], 4
      %s22 = int_to_ptr.vmem [resolvable:$true] %s21
      %24 = dma.hbm_to_vmem [thread:$0]  %s1, 128, %s22, [#allocation4]
    $region9: #{tpu_custom_call.1} parent=1 // pred_fallthru
      _
    // Predicated region
    $region10: #{tpu_custom_call.1} parent=1 // pred_check
      _
    $region11: #{tpu_custom_call.1} parent=1 // pred_check_branch
      %26 = sbr.rel (0) target = $region13
    $region12: #{tpu_custom_call.1} parent=1 // pred_region
      %s28 = ssub.s32 1024, 1024
      %29 = vsyncadd [#allocation7], %s28
      %s30 = sshll.u32 [#allocation6], 4
      %s31 = int_to_ptr.vmem [resolvable:$true] %s30
      %36 = dma.hbm_to_vmem [thread:$0]  %s2, 1024, %s31, [#allocation7], 64, 64, 4
    $region13: #{tpu_custom_call.1} parent=1 // pred_fallthru
      _
    // Predicated region
    $region14: #{tpu_custom_call.1} parent=1 // pred_check
      _
    $region15: #{tpu_custom_call.1} parent=1 // pred_check_branch
      %38 = sbr.rel (0) target = $region17
    $region16: #{tpu_custom_call.1} parent=1 // pred_region
      _
    $region17: #{tpu_custom_call.1} parent=1 // pred_fallthru
      _
    // Predicated region
    $region18: #{tpu_custom_call.1} parent=1 // pred_check
      _
    $region19: #{tpu_custom_call.1} parent=1 // pred_check_branch
      %40 = sbr.rel (0) target = $region21
    $region20: #{tpu_custom_call.1} parent=1 // pred_region
      %41 = dma.done [#allocation4], 128
    $region21: #{tpu_custom_call.1} parent=1 // pred_fallthru
      _
    // Predicated region
    $region22: #{tpu_custom_call.1} parent=1 // pred_check
      _
    $region23: #{tpu_custom_call.1} parent=1 // pred_check_branch
      %43 = sbr.rel (0) target = $region25
    $region24: #{tpu_custom_call.1} parent=1 // pred_region
      %44 = dma.done [#allocation7], 1024
    $region25: #{tpu_custom_call.1} parent=1 // pred_fallthru
      _
    %s46 = sld [smem:[#allocation2]]
    %v47 = vld [vmem:[#allocation6] sm:$0xf]
    %v48 = vld [vmem:[#allocation6 + $0x4] sm:$0xf]
    %v49 = vld [vmem:[#allocation6 + $0x8] sm:$0xf]
    %v50 = vld [vmem:[#allocation6 + $0xc] sm:$0xf]
    %v51 = vld [vmem:[#allocation6 + $0x10] sm:$0xf]
    %v52 = vld [vmem:[#allocation6 + $0x14] sm:$0xf]
    %v53 = vld [vmem:[#allocation6 + $0x18] sm:$0xf]
    %v54 = vld [vmem:[#allocation6 + $0x1c] sm:$0xf]
    %v55 = vld [vmem:[#allocation6 + $0x20] sm:$0xf]
    %v56 = vld [vmem:[#allocation6 + $0x24] sm:$0xf]
    %v57 = vld [vmem:[#allocation6 + $0x28] sm:$0xf]
    %v58 = vld [vmem:[#allocation6 + $0x2c] sm:$0xf]
    %v59 = vld [vmem:[#allocation6 + $0x30] sm:$0xf]
    %v60 = vld [vmem:[#allocation6 + $0x34] sm:$0xf]
    %v61 = vld [vmem:[#allocation6 + $0x38] sm:$0xf]
    %v62 = vld [vmem:[#allocation6 + $0x3c] sm:$0xf]
    %v63 = vld [vmem:[%s3] sm:$0x1]
    %v64 = vld [vmem:[#allocation3] sm:$0xff]
    %v65 = vpack.c.bf16 %v64, %v64
    %v67 = vlaneseq
    %v68 = vshrl.u32 %v67, 7
    %v69 = vsub.s32 0, %v68
    %v70 = vrot.slane %v63, %v69
    %v88 = vunpack.c.l.b16 %v47
    %v89 = vunpack.c.l.b16 %v48
    %v90 = vunpack.c.l.b16 %v49
    %v91 = vunpack.c.l.b16 %v50
    %v92 = vunpack.c.l.b16 %v51
    %v93 = vunpack.c.l.b16 %v52
    %v94 = vunpack.c.l.b16 %v53
    %v95 = vunpack.c.l.b16 %v54
    %v96 = vunpack.c.l.b16 %v55
    %v97 = vunpack.c.l.b16 %v56
    %v98 = vunpack.c.l.b16 %v57
    %v99 = vunpack.c.l.b16 %v58
    %v100 = vunpack.c.l.b16 %v59
    %v101 = vunpack.c.l.b16 %v60
    %v102 = vunpack.c.l.b16 %v61
    %v103 = vunpack.c.l.b16 %v62
    %v104 = vpack.c.b16 %v89, %v88
    %v105 = vpack.c.b16 %v91, %v90
    %v106 = vpack.c.b16 %v93, %v92
    %v107 = vpack.c.b16 %v95, %v94
    %v108 = vpack.c.b16 %v97, %v96
    %v109 = vpack.c.b16 %v99, %v98
    %v110 = vpack.c.b16 %v101, %v100
    %v111 = vpack.c.b16 %v103, %v102
    %120 = vmatprep.subr.bf16.mxu0 0
    %121 = vmatpush1.bf16.msra.mxu0 %v111
    %122 = vmatprep.subr.bf16.mxu0 0
    %123 = vmatpush1.bf16.msra.mxu0 %v110
    %124 = vmatprep.subr.bf16.mxu0 0
    %125 = vmatpush1.bf16.msra.mxu0 %v109
    %126 = vmatprep.subr.bf16.mxu0 0
    %127 = vmatpush1.bf16.msra.mxu0 %v108
    %128 = vmatprep.subr.bf16.mxu0 0
    %129 = vmatpush1.bf16.msra.mxu0 %v107
    %130 = vmatprep.subr.bf16.mxu0 0
    %131 = vmatpush1.bf16.msra.mxu0 %v106
    %132 = vmatprep.subr.bf16.mxu0 0
    %133 = vmatpush1.bf16.msra.mxu0 %v105
    %134 = vmatprep.subr.bf16.mxu0 0
    %135 = vmatpush1.bf16.msra.mxu0 %v104
    %136 = vmatprep.subr.bf16.mxu0 0
    %137 = vmatpush2.bf16.msra.mxu0 0
    %138 = vmatprep.subr.bf16.mxu0 0
    %139 = vmatpush2.bf16.msra.mxu0 0
    %140 = vmatprep.subr.bf16.mxu0 0
    %141 = vmatpush2.bf16.msra.mxu0 0
    %142 = vmatprep.subr.bf16.mxu0 0
    %143 = vmatpush2.bf16.msra.mxu0 0
    %144 = vmatprep.subr.bf16.mxu0 0
    %145 = vmatpush2.bf16.msra.mxu0 0
    %146 = vmatprep.subr.bf16.mxu0 0
    %147 = vmatpush2.bf16.msra.mxu0 0
    %148 = vmatprep.subr.bf16.mxu0 0
    %149 = vmatpush2.bf16.msra.mxu0 0
    %150 = vmatprep.subr.bf16.mxu0 0
    %151 = vmatpush2.bf16.msra.mxu0 0
    %152 = vmatprep.mubr.bf16.mxu0 0
    %153 = vmatmul.mubr.bf16.gmra.mxu0 %v65
    %v154 = vpop.f32.mrf.mxu0
    %v155 = vadd.f32 %v70, %v154
    %v156 = vpop.f32.mrf.mxu0
    %v157 = vpop.f32.mrf.mxu0
    %v158 = vpop.f32.mrf.mxu0
    %159 = vdwg.mxu0
    %v160 = vtanh.pop %v155
    %v161 = vstv %s46
    %v162 = vmul.f32 %v161, %v160
    %v163 = vadd.f32 %v64, %v162
    %v164 = vpack.c.bf16 %v163, %v163
    %165 = vmatprep.subr.bf16.mxu0 0
    %166 = vmatpush1.bf16.msra.mxu0 %v111
    %167 = vmatprep.subr.bf16.mxu0 0
    %168 = vmatpush1.bf16.msra.mxu0 %v110
    %169 = vmatprep.subr.bf16.mxu0 0
    %170 = vmatpush1.bf16.msra.mxu0 %v109
    %171 = vmatprep.subr.bf16.mxu0 0
    %172 = vmatpush1.bf16.msra.mxu0 %v108
    %173 = vmatprep.subr.bf16.mxu0 0
    %174 = vmatpush1.bf16.msra.mxu0 %v107
    %175 = vmatprep.subr.bf16.mxu0 0
    %176 = vmatpush1.bf16.msra.mxu0 %v106
    %177 = vmatprep.subr.bf16.mxu0 0
    %178 = vmatpush1.bf16.msra.mxu0 %v105
    %179 = vmatprep.subr.bf16.mxu0 0
    %180 = vmatpush1.bf16.msra.mxu0 %v104
    %181 = vmatprep.subr.bf16.mxu0 0
    %182 = vmatpush2.bf16.msra.mxu0 0
    %183 = vmatprep.subr.bf16.mxu0 0
    %184 = vmatpush2.bf16.msra.mxu0 0
    %185 = vmatprep.subr.bf16.mxu0 0
    %186 = vmatpush2.bf16.msra.mxu0 0
    %187 = vmatprep.subr.bf16.mxu0 0
    %188 = vmatpush2.bf16.msra.mxu0 0
    %189 = vmatprep.subr.bf16.mxu0 0
    %190 = vmatpush2.bf16.msra.mxu0 0
    %191 = vmatprep.subr.bf16.mxu0 0
    %192 = vmatpush2.bf16.msra.mxu0 0
    %193 = vmatprep.subr.bf16.mxu0 0
    %194 = vmatpush2.bf16.msra.mxu0 0
    %195 = vmatprep.subr.bf16.mxu0 0
    %196 = vmatpush2.bf16.msra.mxu0 0
    %197 = vmatprep.mubr.bf16.mxu0 0
    %198 = vmatmul.mubr.bf16.gmra.mxu0 %v164
    %v199 = vpop.f32.mrf.mxu0
    %v200 = vadd.f32 %v70, %v199
    %v201 = vpop.f32.mrf.mxu0
    %v202 = vpop.f32.mrf.mxu0
    %v203 = vpop.f32.mrf.mxu0
    %204 = vdwg.mxu0
    %v205 = vtanh.pop %v200
    %v206 = vmul.f32 %v161, %v205
    %v207 = vadd.f32 %v163, %v206
    %v208 = vpack.c.bf16 %v207, %v207
    %209 = vmatprep.subr.bf16.mxu0 0
    %210 = vmatpush1.bf16.msra.mxu0 %v111
    %211 = vmatprep.subr.bf16.mxu0 0
    %212 = vmatpush1.bf16.msra.mxu0 %v110
    %213 = vmatprep.subr.bf16.mxu0 0
    %214 = vmatpush1.bf16.msra.mxu0 %v109
    %215 = vmatprep.subr.bf16.mxu0 0
    %216 = vmatpush1.bf16.msra.mxu0 %v108
    %217 = vmatprep.subr.bf16.mxu0 0
    %218 = vmatpush1.bf16.msra.mxu0 %v107
    %219 = vmatprep.subr.bf16.mxu0 0
    %220 = vmatpush1.bf16.msra.mxu0 %v106
    %221 = vmatprep.subr.bf16.mxu0 0
    %222 = vmatpush1.bf16.msra.mxu0 %v105
    %223 = vmatprep.subr.bf16.mxu0 0
    %224 = vmatpush1.bf16.msra.mxu0 %v104
    %225 = vmatprep.subr.bf16.mxu0 0
    %226 = vmatpush2.bf16.msra.mxu0 0
    %227 = vmatprep.subr.bf16.mxu0 0
    %228 = vmatpush2.bf16.msra.mxu0 0
    %229 = vmatprep.subr.bf16.mxu0 0
    %230 = vmatpush2.bf16.msra.mxu0 0
    %231 = vmatprep.subr.bf16.mxu0 0
    %232 = vmatpush2.bf16.msra.mxu0 0
    %233 = vmatprep.subr.bf16.mxu0 0
    %234 = vmatpush2.bf16.msra.mxu0 0
    %235 = vmatprep.subr.bf16.mxu0 0
    %236 = vmatpush2.bf16.msra.mxu0 0
    %237 = vmatprep.subr.bf16.mxu0 0
    %238 = vmatpush2.bf16.msra.mxu0 0
    %239 = vmatprep.subr.bf16.mxu0 0
    %240 = vmatpush2.bf16.msra.mxu0 0
    %241 = vmatprep.mubr.bf16.mxu0 0
    %242 = vmatmul.mubr.bf16.gmra.mxu0 %v208
    %v243 = vpop.f32.mrf.mxu0
    %v244 = vadd.f32 %v70, %v243
    %v245 = vpop.f32.mrf.mxu0
    %v246 = vpop.f32.mrf.mxu0
    %v247 = vpop.f32.mrf.mxu0
    %248 = vdwg.mxu0
    %v249 = vtanh.pop %v244
    %v250 = vmul.f32 %v161, %v249
    %v251 = vadd.f32 %v207, %v250
    %v252 = vpack.c.bf16 %v251, %v251
    %253 = vmatprep.subr.bf16.mxu0 0
    %254 = vmatpush1.bf16.msra.mxu0 %v111
    %255 = vmatprep.subr.bf16.mxu0 0
    %256 = vmatpush1.bf16.msra.mxu0 %v110
    %257 = vmatprep.subr.bf16.mxu0 0
    %258 = vmatpush1.bf16.msra.mxu0 %v109
    %259 = vmatprep.subr.bf16.mxu0 0
    %260 = vmatpush1.bf16.msra.mxu0 %v108
    %261 = vmatprep.subr.bf16.mxu0 0
    %262 = vmatpush1.bf16.msra.mxu0 %v107
    %263 = vmatprep.subr.bf16.mxu0 0
    %264 = vmatpush1.bf16.msra.mxu0 %v106
    %265 = vmatprep.subr.bf16.mxu0 0
    %266 = vmatpush1.bf16.msra.mxu0 %v105
    %267 = vmatprep.subr.bf16.mxu0 0
    %268 = vmatpush1.bf16.msra.mxu0 %v104
    %269 = vmatprep.subr.bf16.mxu0 0
    %270 = vmatpush2.bf16.msra.mxu0 0
    %271 = vmatprep.subr.bf16.mxu0 0
    %272 = vmatpush2.bf16.msra.mxu0 0
    %273 = vmatprep.subr.bf16.mxu0 0
    %274 = vmatpush2.bf16.msra.mxu0 0
    %275 = vmatprep.subr.bf16.mxu0 0
    %276 = vmatpush2.bf16.msra.mxu0 0
    %277 = vmatprep.subr.bf16.mxu0 0
    %278 = vmatpush2.bf16.msra.mxu0 0
    %279 = vmatprep.subr.bf16.mxu0 0
    %280 = vmatpush2.bf16.msra.mxu0 0
    %281 = vmatprep.subr.bf16.mxu0 0
    %282 = vmatpush2.bf16.msra.mxu0 0
    %283 = vmatprep.subr.bf16.mxu0 0
    %284 = vmatpush2.bf16.msra.mxu0 0
    %285 = vmatprep.mubr.bf16.mxu0 0
    %286 = vmatmul.mubr.bf16.gmra.mxu0 %v252
    %v287 = vpop.f32.mrf.mxu0
    %v288 = vadd.f32 %v70, %v287
    %v289 = vpop.f32.mrf.mxu0
    %v290 = vpop.f32.mrf.mxu0
    %v291 = vpop.f32.mrf.mxu0
    %292 = vdwg.mxu0
    %v293 = vtanh.pop %v288
    %v294 = vmul.f32 %v161, %v293
    %v295 = vadd.f32 %v251, %v294
    %v296 = vpack.c.bf16 %v295, %v295
    %297 = vmatprep.subr.bf16.mxu0 0
    %298 = vmatpush1.bf16.msra.mxu0 %v111
    %299 = vmatprep.subr.bf16.mxu0 0
    %300 = vmatpush1.bf16.msra.mxu0 %v110
    %301 = vmatprep.subr.bf16.mxu0 0
    %302 = vmatpush1.bf16.msra.mxu0 %v109
    %303 = vmatprep.subr.bf16.mxu0 0
    %304 = vmatpush1.bf16.msra.mxu0 %v108
    %305 = vmatprep.subr.bf16.mxu0 0
    %306 = vmatpush1.bf16.msra.mxu0 %v107
    %307 = vmatprep.subr.bf16.mxu0 0
    %308 = vmatpush1.bf16.msra.mxu0 %v106
    %309 = vmatprep.subr.bf16.mxu0 0
    %310 = vmatpush1.bf16.msra.mxu0 %v105
    %311 = vmatprep.subr.bf16.mxu0 0
    %312 = vmatpush1.bf16.msra.mxu0 %v104
    %313 = vmatprep.subr.bf16.mxu0 0
    %314 = vmatpush2.bf16.msra.mxu0 0
    %315 = vmatprep.subr.bf16.mxu0 0
    %316 = vmatpush2.bf16.msra.mxu0 0
    %317 = vmatprep.subr.bf16.mxu0 0
    %318 = vmatpush2.bf16.msra.mxu0 0
    %319 = vmatprep.subr.bf16.mxu0 0
    %320 = vmatpush2.bf16.msra.mxu0 0
    %321 = vmatprep.subr.bf16.mxu0 0
    %322 = vmatpush2.bf16.msra.mxu0 0
    %323 = vmatprep.subr.bf16.mxu0 0
    %324 = vmatpush2.bf16.msra.mxu0 0
    %325 = vmatprep.subr.bf16.mxu0 0
    %326 = vmatpush2.bf16.msra.mxu0 0
    %327 = vmatprep.subr.bf16.mxu0 0
    %328 = vmatpush2.bf16.msra.mxu0 0
    %329 = vmatprep.mubr.bf16.mxu0 0
    %330 = vmatmul.mubr.bf16.gmra.mxu0 %v296
    %v331 = vpop.f32.mrf.mxu0
    %v332 = vadd.f32 %v70, %v331
    %v333 = vpop.f32.mrf.mxu0
    %v334 = vpop.f32.mrf.mxu0
    %v335 = vpop.f32.mrf.mxu0
    %336 = vdwg.mxu0
    %v337 = vtanh.pop %v332
    %v338 = vmul.f32 %v161, %v337
    %v339 = vadd.f32 %v295, %v338
    %v340 = vpack.c.bf16 %v339, %v339
    %341 = vmatprep.subr.bf16.mxu0 0
    %342 = vmatpush1.bf16.msra.mxu0 %v111
    %343 = vmatprep.subr.bf16.mxu0 0
    %344 = vmatpush1.bf16.msra.mxu0 %v110
    %345 = vmatprep.subr.bf16.mxu0 0
    %346 = vmatpush1.bf16.msra.mxu0 %v109
    %347 = vmatprep.subr.bf16.mxu0 0
    %348 = vmatpush1.bf16.msra.mxu0 %v108
    %349 = vmatprep.subr.bf16.mxu0 0
    %350 = vmatpush1.bf16.msra.mxu0 %v107
    %351 = vmatprep.subr.bf16.mxu0 0
    %352 = vmatpush1.bf16.msra.mxu0 %v106
    %353 = vmatprep.subr.bf16.mxu0 0
    %354 = vmatpush1.bf16.msra.mxu0 %v105
    %355 = vmatprep.subr.bf16.mxu0 0
    %356 = vmatpush1.bf16.msra.mxu0 %v104
    %357 = vmatprep.subr.bf16.mxu0 0
    %358 = vmatpush2.bf16.msra.mxu0 0
    %359 = vmatprep.subr.bf16.mxu0 0
    %360 = vmatpush2.bf16.msra.mxu0 0
    %361 = vmatprep.subr.bf16.mxu0 0
    %362 = vmatpush2.bf16.msra.mxu0 0
    %363 = vmatprep.subr.bf16.mxu0 0
    %364 = vmatpush2.bf16.msra.mxu0 0
    %365 = vmatprep.subr.bf16.mxu0 0
    %366 = vmatpush2.bf16.msra.mxu0 0
    %367 = vmatprep.subr.bf16.mxu0 0
    %368 = vmatpush2.bf16.msra.mxu0 0
    %369 = vmatprep.subr.bf16.mxu0 0
    %370 = vmatpush2.bf16.msra.mxu0 0
    %371 = vmatprep.subr.bf16.mxu0 0
    %372 = vmatpush2.bf16.msra.mxu0 0
    %373 = vmatprep.mubr.bf16.mxu0 0
    %374 = vmatmul.mubr.bf16.gmra.mxu0 %v340
    %v375 = vpop.f32.mrf.mxu0
    %v376 = vadd.f32 %v70, %v375
    %v377 = vpop.f32.mrf.mxu0
    %v378 = vpop.f32.mrf.mxu0
    %v379 = vpop.f32.mrf.mxu0
    %380 = vdwg.mxu0
    %v381 = vtanh.pop %v376
    %v382 = vmul.f32 %v161, %v381
    %v383 = vadd.f32 %v339, %v382
    %v384 = vpack.c.bf16 %v383, %v383
    %385 = vmatprep.subr.bf16.mxu0 0
    %386 = vmatpush1.bf16.msra.mxu0 %v111
    %387 = vmatprep.subr.bf16.mxu0 0
    %388 = vmatpush1.bf16.msra.mxu0 %v110
    %389 = vmatprep.subr.bf16.mxu0 0
    %390 = vmatpush1.bf16.msra.mxu0 %v109
    %391 = vmatprep.subr.bf16.mxu0 0
    %392 = vmatpush1.bf16.msra.mxu0 %v108
    %393 = vmatprep.subr.bf16.mxu0 0
    %394 = vmatpush1.bf16.msra.mxu0 %v107
    %395 = vmatprep.subr.bf16.mxu0 0
    %396 = vmatpush1.bf16.msra.mxu0 %v106
    %397 = vmatprep.subr.bf16.mxu0 0
    %398 = vmatpush1.bf16.msra.mxu0 %v105
    %399 = vmatprep.subr.bf16.mxu0 0
    %400 = vmatpush1.bf16.msra.mxu0 %v104
    %401 = vmatprep.subr.bf16.mxu0 0
    %402 = vmatpush2.bf16.msra.mxu0 0
    %403 = vmatprep.subr.bf16.mxu0 0
    %404 = vmatpush2.bf16.msra.mxu0 0
    %405 = vmatprep.subr.bf16.mxu0 0
    %406 = vmatpush2.bf16.msra.mxu0 0
    %407 = vmatprep.subr.bf16.mxu0 0
    %408 = vmatpush2.bf16.msra.mxu0 0
    %409 = vmatprep.subr.bf16.mxu0 0
    %410 = vmatpush2.bf16.msra.mxu0 0
    %411 = vmatprep.subr.bf16.mxu0 0
    %412 = vmatpush2.bf16.msra.mxu0 0
    %413 = vmatprep.subr.bf16.mxu0 0
    %414 = vmatpush2.bf16.msra.mxu0 0
    %415 = vmatprep.subr.bf16.mxu0 0
    %416 = vmatpush2.bf16.msra.mxu0 0
    %417 = vmatprep.mubr.bf16.mxu0 0
    %418 = vmatmul.mubr.bf16.gmra.mxu0 %v384
    %v419 = vpop.f32.mrf.mxu0
    %v420 = vadd.f32 %v70, %v419
    %v421 = vpop.f32.mrf.mxu0
    %v422 = vpop.f32.mrf.mxu0
    %v423 = vpop.f32.mrf.mxu0
    %424 = vdwg.mxu0
    %v425 = vtanh.pop %v420
    %v426 = vmul.f32 %v161, %v425
    %v427 = vadd.f32 %v383, %v426
    %v428 = vpack.c.bf16 %v427, %v427
    %429 = vmatprep.subr.bf16.mxu0 0
    %430 = vmatpush1.bf16.msra.mxu0 %v111
    %431 = vmatprep.subr.bf16.mxu0 0
    %432 = vmatpush1.bf16.msra.mxu0 %v110
    %433 = vmatprep.subr.bf16.mxu0 0
    %434 = vmatpush1.bf16.msra.mxu0 %v109
    %435 = vmatprep.subr.bf16.mxu0 0
    %436 = vmatpush1.bf16.msra.mxu0 %v108
    %437 = vmatprep.subr.bf16.mxu0 0
    %438 = vmatpush1.bf16.msra.mxu0 %v107
    %439 = vmatprep.subr.bf16.mxu0 0
    %440 = vmatpush1.bf16.msra.mxu0 %v106
    %441 = vmatprep.subr.bf16.mxu0 0
    %442 = vmatpush1.bf16.msra.mxu0 %v105
    %443 = vmatprep.subr.bf16.mxu0 0
    %444 = vmatpush1.bf16.msra.mxu0 %v104
    %445 = vmatprep.subr.bf16.mxu0 0
    %446 = vmatpush2.bf16.msra.mxu0 0
    %447 = vmatprep.subr.bf16.mxu0 0
    %448 = vmatpush2.bf16.msra.mxu0 0
    %449 = vmatprep.subr.bf16.mxu0 0
    %450 = vmatpush2.bf16.msra.mxu0 0
    %451 = vmatprep.subr.bf16.mxu0 0
    %452 = vmatpush2.bf16.msra.mxu0 0
    %453 = vmatprep.subr.bf16.mxu0 0
    %454 = vmatpush2.bf16.msra.mxu0 0
    %455 = vmatprep.subr.bf16.mxu0 0
    %456 = vmatpush2.bf16.msra.mxu0 0
    %457 = vmatprep.subr.bf16.mxu0 0
    %458 = vmatpush2.bf16.msra.mxu0 0
    %459 = vmatprep.subr.bf16.mxu0 0
    %460 = vmatpush2.bf16.msra.mxu0 0
    %461 = vmatprep.mubr.bf16.mxu0 0
    %462 = vmatmul.mubr.bf16.gmra.mxu0 %v428
    %v463 = vpop.f32.mrf.mxu0
    %v464 = vadd.f32 %v70, %v463
    %v465 = vpop.f32.mrf.mxu0
    %v466 = vpop.f32.mrf.mxu0
    %v467 = vpop.f32.mrf.mxu0
    %468 = vdwg.mxu0
    %v469 = vtanh.pop %v464
    %v470 = vmul.f32 %v161, %v469
    %v471 = vadd.f32 %v427, %v470
    %v472 = vpack.c.bf16 %v471, %v471
    %473 = vmatprep.subr.bf16.mxu0 0
    %474 = vmatpush1.bf16.msra.mxu0 %v111
    %475 = vmatprep.subr.bf16.mxu0 0
    %476 = vmatpush1.bf16.msra.mxu0 %v110
    %477 = vmatprep.subr.bf16.mxu0 0
    %478 = vmatpush1.bf16.msra.mxu0 %v109
    %479 = vmatprep.subr.bf16.mxu0 0
    %480 = vmatpush1.bf16.msra.mxu0 %v108
    %481 = vmatprep.subr.bf16.mxu0 0
    %482 = vmatpush1.bf16.msra.mxu0 %v107
    %483 = vmatprep.subr.bf16.mxu0 0
    %484 = vmatpush1.bf16.msra.mxu0 %v106
    %485 = vmatprep.subr.bf16.mxu0 0
    %486 = vmatpush1.bf16.msra.mxu0 %v105
    %487 = vmatprep.subr.bf16.mxu0 0
    %488 = vmatpush1.bf16.msra.mxu0 %v104
    %489 = vmatprep.subr.bf16.mxu0 0
    %490 = vmatpush2.bf16.msra.mxu0 0
    %491 = vmatprep.subr.bf16.mxu0 0
    %492 = vmatpush2.bf16.msra.mxu0 0
    %493 = vmatprep.subr.bf16.mxu0 0
    %494 = vmatpush2.bf16.msra.mxu0 0
    %495 = vmatprep.subr.bf16.mxu0 0
    %496 = vmatpush2.bf16.msra.mxu0 0
    %497 = vmatprep.subr.bf16.mxu0 0
    %498 = vmatpush2.bf16.msra.mxu0 0
    %499 = vmatprep.subr.bf16.mxu0 0
    %500 = vmatpush2.bf16.msra.mxu0 0
    %501 = vmatprep.subr.bf16.mxu0 0
    %502 = vmatpush2.bf16.msra.mxu0 0
    %503 = vmatprep.subr.bf16.mxu0 0
    %504 = vmatpush2.bf16.msra.mxu0 0
    %505 = vmatprep.mubr.bf16.mxu0 0
    %506 = vmatmul.mubr.bf16.gmra.mxu0 %v472
    %v507 = vpop.f32.mrf.mxu0
    %v508 = vadd.f32 %v70, %v507
    %v509 = vpop.f32.mrf.mxu0
    %v510 = vpop.f32.mrf.mxu0
    %v511 = vpop.f32.mrf.mxu0
    %512 = vdwg.mxu0
    %v513 = vtanh.pop %v508
    %v514 = vmul.f32 %v161, %v513
    %v515 = vadd.f32 %v471, %v514
    %v516 = vpack.c.bf16 %v515, %v515
    %517 = vmatprep.subr.bf16.mxu0 0
    %518 = vmatpush1.bf16.msra.mxu0 %v111
    %519 = vmatprep.subr.bf16.mxu0 0
    %520 = vmatpush1.bf16.msra.mxu0 %v110
    %521 = vmatprep.subr.bf16.mxu0 0
    %522 = vmatpush1.bf16.msra.mxu0 %v109
    %523 = vmatprep.subr.bf16.mxu0 0
    %524 = vmatpush1.bf16.msra.mxu0 %v108
    %525 = vmatprep.subr.bf16.mxu0 0
    %526 = vmatpush1.bf16.msra.mxu0 %v107
    %527 = vmatprep.subr.bf16.mxu0 0
    %528 = vmatpush1.bf16.msra.mxu0 %v106
    %529 = vmatprep.subr.bf16.mxu0 0
    %530 = vmatpush1.bf16.msra.mxu0 %v105
    %531 = vmatprep.subr.bf16.mxu0 0
    %532 = vmatpush1.bf16.msra.mxu0 %v104
    %533 = vmatprep.subr.bf16.mxu0 0
    %534 = vmatpush2.bf16.msra.mxu0 0
    %535 = vmatprep.subr.bf16.mxu0 0
    %536 = vmatpush2.bf16.msra.mxu0 0
    %537 = vmatprep.subr.bf16.mxu0 0
    %538 = vmatpush2.bf16.msra.mxu0 0
    %539 = vmatprep.subr.bf16.mxu0 0
    %540 = vmatpush2.bf16.msra.mxu0 0
    %541 = vmatprep.subr.bf16.mxu0 0
    %542 = vmatpush2.bf16.msra.mxu0 0
    %543 = vmatprep.subr.bf16.mxu0 0
    %544 = vmatpush2.bf16.msra.mxu0 0
    %545 = vmatprep.subr.bf16.mxu0 0
    %546 = vmatpush2.bf16.msra.mxu0 0
    %547 = vmatprep.subr.bf16.mxu0 0
    %548 = vmatpush2.bf16.msra.mxu0 0
    %549 = vmatprep.mubr.bf16.mxu0 0
    %550 = vmatmul.mubr.bf16.gmra.mxu0 %v516
    %v551 = vpop.f32.mrf.mxu0
    %v552 = vadd.f32 %v70, %v551
    %v553 = vpop.f32.mrf.mxu0
    %v554 = vpop.f32.mrf.mxu0
    %v555 = vpop.f32.mrf.mxu0
    %556 = vdwg.mxu0
    %v557 = vtanh.pop %v552
    %v558 = vmul.f32 %v161, %v557
    %v559 = vadd.f32 %v515, %v558
    %560 = vst [vmem:[#allocation8] sm:$0xff] %v559
    // Predicated region
    $region26: #{tpu_custom_call.1} parent=1 // pred_check
      _
    $region27: #{tpu_custom_call.1} parent=1 // pred_check_branch
      %562 = sbr.rel (0) target = $region29
    $region28: #{tpu_custom_call.1} parent=1 // pred_region
      %s564 = ssub.s32 128, 128
      %565 = vsyncadd [#allocation5], %s564
      %s567 = sshll.u32 [#allocation8], 4
      %s568 = int_to_ptr.vmem [resolvable:$true] %s567
      %570 = dma.vmem_to_hbm [thread:$0]  %s568, 128, %s4, [#allocation5]
    $region29: #{tpu_custom_call.1} parent=1 // pred_fallthru
      _
    // Predicated region
    $region30: #{tpu_custom_call.1} parent=1 // pred_check
      _
    $region31: #{tpu_custom_call.1} parent=1 // pred_check_branch
      %572 = sbr.rel (0) target = $region33
    $region32: #{tpu_custom_call.1} parent=1 // pred_region
      %573 = dma.done [#allocation5], 128
    $region33: #{tpu_custom_call.1} parent=1 // pred_fallthru
      _
    %574 = vsyncpa [#allocation4], 1
    %575 = vsyncpa [#allocation7], 1
    %576 = vsyncpa [#allocation5], 1

</llo_original>
